<compile_context>
chip_gen: v7x
topology: tpu7x:2x2x1
jax: 0.10.0
libtpu: 0.0.40
codegen_flags: <defaults>
</compile_context>

<pallas_src>
import functools

import jax
import jax.numpy as jnp
from jax.experimental import pallas as pl
from jax.experimental.pallas import tpu as pltpu


def _round_up(n, m):
    return ((n + m - 1) // m) * m


def _num_tensorcores():
    """Best-effort TensorCores-per-chip query (v7x: 2, v5e/v6e: 1). Defaults to 1."""
    try:
        info = pltpu.get_tpu_info()
        for attr in ("num_cores", "core_count", "num_tensor_cores", "tensorcore_count"):
            n = getattr(info, attr, None)
            if isinstance(n, int) and n > 0:
                return n
    except Exception:
        pass
    return 1


def _linpyr_kernel(x_ref, *refs, n_tail, out_pad, out_f):
    """refs = [w0_fused, b0_fused, (w_i, b_i) for remaining FCNN layers..., out_ref]."""
    out_ref = refs[-1]
    p = refs[:-1]

    # x streams from HBM as f32; cast to bf16 in-register (VPU work, free under the
    # memory roofline) instead of a separate wrapper-side cast pass.
    x = x_ref[...].astype(jnp.bfloat16)

    # Fused first stage: lanes [0, out_pad) are the zero-padded linear branch, lanes
    # [out_pad, out_pad + h0) are FCNN layer 0.  out_pad is a multiple of 128 so the
    # split is lane-aligned.  f32 accumulation on the MXU.
    y0 = jnp.dot(x, p[0][...], preferred_element_type=jnp.float32) + p[1][...]
    lin = y0[:, :out_f]                      # keep only the real columns live
    h = jnp.maximum(y0[:, out_pad:], 0.0)    # FCNN layer 0 + ReLU

    # Remaining FCNN layers: ReLU between hidden layers, none after the output layer.
    for i in range(n_tail):
        w = p[2 + 2 * i][...]
        b = p[3 + 2 * i][...]
        h = jnp.dot(h.astype(jnp.bfloat16), w, preferred_element_type=jnp.float32) + b
        if i < n_tail - 1:
            h = jnp.maximum(h, 0.0)

    # Elementwise product of the two branches; lane-count = out_f (full array dim).
    out_ref[...] = (lin * h).astype(out_ref.dtype)


def init_linpyr_params(key, in_features, hidden_layers, out_features):
    """Deterministic parameter init mirroring the PyTorch module's shapes (f32).

    w_lin : [in_features, out_features]   (transposed vs. torch Linear.weight)
    b_lin : [1, out_features]
    pyr_ws / pyr_bs : FCNN stack (Linear(in,h0), ..., Linear(h_last,out))
    """
    assert len(hidden_layers) >= 1, "hidden_layers must be non-empty (as in the PyTorch module)"
    dims = [in_features] + list(hidden_layers) + [out_features]

    def linear_init(k, fan_in, fan_out):
        kw, kb = jax.random.split(k)
        bound = 1.0 / jnp.sqrt(jnp.float32(fan_in))
        w = jax.random.uniform(kw, (fan_in, fan_out), jnp.float32, -bound, bound)
        b = jax.random.uniform(kb, (1, fan_out), jnp.float32, -bound, bound)
        return w, b

    keys = jax.random.split(key, 1 + (len(dims) - 1))
    w_lin, b_lin = linear_init(keys[0], in_features, out_features)
    pyr_ws, pyr_bs = [], []
    for i in range(len(dims) - 1):
        w, b = linear_init(keys[1 + i], dims[i], dims[i + 1])
        pyr_ws.append(w)
        pyr_bs.append(b)
    return {"w_lin": w_lin, "b_lin": b_lin, "pyr_ws": pyr_ws, "pyr_bs": pyr_bs}


def _pack_params(params, out_pad):
    """Fuse linear branch with FCNN layer 0 (linear branch zero-padded to out_pad lanes
    so the split stays 128-aligned), cast weights to bf16 (biases stay f32).
    Returns (flat_param_list, n_tail_layers)."""
    w_lin, b_lin = params["w_lin"], params["b_lin"]
    pyr_ws, pyr_bs = params["pyr_ws"], params["pyr_bs"]
    n_pyr = len(pyr_ws)
    assert n_pyr >= 2, "hidden_layers must be non-empty (as in the PyTorch module)"
    out_f = w_lin.shape[1]
    assert out_pad % 128 == 0 and out_f <= out_pad

    pad = out_pad - out_f
    w_lin_p = jnp.pad(w_lin, ((0, 0), (0, pad)))
    b_lin_p = jnp.pad(b_lin, ((0, 0), (0, pad)))

    # Fused first-stage weight: [in, out_pad + h0]; linear branch first (128-aligned split).
    w0 = jnp.concatenate([w_lin_p, pyr_ws[0]], axis=1).astype(jnp.bfloat16)
    b0 = jnp.concatenate([b_lin_p, pyr_bs[0]], axis=1).astype(jnp.float32)

    flat = [w0, b0]
    for i in range(1, n_pyr):
        flat.append(pyr_ws[i].astype(jnp.bfloat16))   # no 128-lane padding anymore
        flat.append(pyr_bs[i].astype(jnp.float32))
    return flat, n_pyr - 1


def linpyr_forward(x, params, *, tile_b=4096, out_dtype=jnp.bfloat16):
    B, F = x.shape
    out_f = params["w_lin"].shape[1]
    out_pad = _round_up(out_f, 128)
    flat, n_tail = _pack_params(params, out_pad)

    # --- batch tiling -----------------------------------------------------------------
    # Pick the biggest tile the batch allows (amortizes the ~0.35 us per-step overhead);
    # only force >= 2 grid steps on multi-TensorCore chips (v7x) so both TCs get work.
    tile_b = max(8, min(tile_b, _round_up(B, 8)))
    tile_b = (tile_b // 8) * 8
    if _num_tensorcores() >= 2 and pl.cdiv(B, tile_b) < 2 and B > 8:
        tile_b = max(8, _round_up(pl.cdiv(B, 2), 8))
    grid = (pl.cdiv(B, tile_b),)  # partial edge block is fine: OOB rows never written back

    # x streams per-tile (f32); every parameter is a full-array block with a constant
    # index_map (stays VMEM-resident across grid steps).
    in_specs = [pl.BlockSpec((tile_b, F), lambda i: (i, 0))]
    for prm in flat:
        in_specs.append(pl.BlockSpec(prm.shape, lambda i: (0, 0)))
    out_specs = pl.BlockSpec((tile_b, out_f), lambda i: (i, 0))

    kernel = functools.partial(_linpyr_kernel, n_tail=n_tail, out_pad=out_pad, out_f=out_f)

    # Advisory cost estimate (mem-bound custom call) for XLA's scheduler.
    dims = [F] + [w.shape[1] for w in params["pyr_ws"]]
    h0 = dims[1]
    flops = 2 * B * (F * (out_pad + h0) + sum(a * b for a, b in zip(dims[1:-1], dims[2:])))
    out_itemsize = jnp.ones((), out_dtype).dtype.itemsize
    bytes_accessed = (B * F * x.dtype.itemsize
                      + B * out_f * out_itemsize
                      + sum(int(p.size) * p.dtype.itemsize for p in flat))

    out = pl.pallas_call(
        kernel,
        grid=grid,
        in_specs=in_specs,
        out_specs=out_specs,
        out_shape=jax.ShapeDtypeStruct((B, out_f), out_dtype),
        compiler_params=pltpu.CompilerParams(dimension_semantics=("parallel",)),
        cost_estimate=pl.CostEstimate(flops=int(flops), transcendentals=0,
                                      bytes_accessed=int(bytes_accessed)),
    )(x, *flat)
    return out


def linpyr_reference(x, params):
    """Pure-JAX f32 reference of the PyTorch forward, for verification."""
    lin = x @ params["w_lin"] + params["b_lin"]
    h = x
    n = len(params["pyr_ws"])
    for i, (w, b) in enumerate(zip(params["pyr_ws"], params["pyr_bs"])):
        h = h @ w + b
        if i < n - 1:
            h = jnp.maximum(h, 0.0)
    return lin * h


if __name__ == "__main__":
    # configs = {'in_features': 32, 'hidden_layers': [64, 32], 'out_features': 16}
    in_features, hidden_layers, out_features = 32, [64, 32], 16
    batch = 256  # small demo batch

    key = jax.random.PRNGKey(0)
    kx, kp = jax.random.split(key)
    x = jax.random.normal(kx, (batch, in_features), jnp.float32)
    params = init_linpyr_params(kp, in_features, hidden_layers, out_features)

    out = linpyr_forward(x, params)
    out = jax.block_until_ready(out)

    ref = linpyr_reference(x, params)
    assert out.shape == (batch, out_features)
    # bf16 weights/activations/output (f32 accumulation) vs. f32 reference.
    assert jnp.allclose(out.astype(jnp.float32), ref, atol=5e-2, rtol=5e-2), "mismatch vs reference"

    print("KERNEL_OK")
</pallas_src>

<mosaic_0001>
module attributes {stable_mosaic.version = 11 : i64} {
  func.func @_linpyr_kernel(%arg0: i32, %arg1: memref<256x32xf32, #tpu.memory_space<vmem>>, %arg2: memref<32x192xbf16, #tpu.memory_space<vmem>>, %arg3: memref<1x192xf32, #tpu.memory_space<vmem>>, %arg4: memref<64x32xbf16, #tpu.memory_space<vmem>>, %arg5: memref<1x32xf32, #tpu.memory_space<vmem>>, %arg6: memref<32x16xbf16, #tpu.memory_space<vmem>>, %arg7: memref<1x16xf32, #tpu.memory_space<vmem>>, %arg8: memref<256x16xbf16, #tpu.memory_space<vmem>>) attributes {dimension_semantics = [#tpu.dimension_semantics<parallel>], iteration_bounds = array<i64: 1>, scalar_prefetch = 0 : i64, scratch_operands = 0 : i64, tpu.core_type = #tpu.core_type<tc>, window_params = [{transform_indices = @transform_0, window_bounds = array<i64: 256, 32>}, {pipeline_mode = #tpu.pipeline_mode<synchronous>, transform_indices = @transform_1, window_bounds = array<i64: 32, 192>}, {pipeline_mode = #tpu.pipeline_mode<synchronous>, transform_indices = @transform_2, window_bounds = array<i64: 1, 192>}, {pipeline_mode = #tpu.pipeline_mode<synchronous>, transform_indices = @transform_3, window_bounds = array<i64: 64, 32>}, {pipeline_mode = #tpu.pipeline_mode<synchronous>, transform_indices = @transform_4, window_bounds = array<i64: 1, 32>}, {pipeline_mode = #tpu.pipeline_mode<synchronous>, transform_indices = @transform_5, window_bounds = array<i64: 32, 16>}, {pipeline_mode = #tpu.pipeline_mode<synchronous>, transform_indices = @transform_6, window_bounds = array<i64: 1, 16>}, {transform_indices = @transform_7, window_bounds = array<i64: 256, 16>}]} {
    %c0 = arith.constant 0 : index
    %c0_0 = arith.constant 0 : index
    %0 = vector.load %arg1[%c0, %c0_0] : memref<256x32xf32, #tpu.memory_space<vmem>>, vector<256x32xf32>
    %1 = arith.truncf %0 : vector<256x32xf32> to vector<256x32xbf16>
    %c0_1 = arith.constant 0 : index
    %c0_2 = arith.constant 0 : index
    %2 = vector.load %arg2[%c0_1, %c0_2] : memref<32x192xbf16, #tpu.memory_space<vmem>>, vector<32x192xbf16>
    %cst = arith.constant dense<0.000000e+00> : vector<256x192xf32>
    %3 = tpu.matmul %1, %2, %cst {dimension_numbers = #tpu.dot_dimension_numbers<[1], [0], [0], [1], [0, 0, 1, 1], [], []>} : vector<256x32xbf16>, vector<32x192xbf16>, vector<256x192xf32> -> vector<256x192xf32>
    %c0_3 = arith.constant 0 : index
    %c0_4 = arith.constant 0 : index
    %4 = vector.load %arg3[%c0_3, %c0_4] : memref<1x192xf32, #tpu.memory_space<vmem>>, vector<1x192xf32>
    %5 = vector.broadcast %4 : vector<1x192xf32> to vector<256x192xf32>
    %6 = arith.addf %3, %5 : vector<256x192xf32>
    %7 = vector.extract_strided_slice %6 {offsets = [0, 0], sizes = [256, 16], strides = [1, 1]} : vector<256x192xf32> to vector<256x16xf32>
    %8 = vector.extract_strided_slice %6 {offsets = [0, 128], sizes = [256, 64], strides = [1, 1]} : vector<256x192xf32> to vector<256x64xf32>
    %cst_5 = arith.constant 0.000000e+00 : f32
    %9 = vector.broadcast %cst_5 : f32 to vector<256x64xf32>
    %10 = arith.maximumf %8, %9 : vector<256x64xf32>
    %c0_6 = arith.constant 0 : index
    %c0_7 = arith.constant 0 : index
    %11 = vector.load %arg4[%c0_6, %c0_7] : memref<64x32xbf16, #tpu.memory_space<vmem>>, vector<64x32xbf16>
    %c0_8 = arith.constant 0 : index
    %c0_9 = arith.constant 0 : index
    %12 = vector.load %arg5[%c0_8, %c0_9] : memref<1x32xf32, #tpu.memory_space<vmem>>, vector<1x32xf32>
    %13 = arith.truncf %10 : vector<256x64xf32> to vector<256x64xbf16>
    %cst_10 = arith.constant dense<0.000000e+00> : vector<256x32xf32>
    %14 = tpu.matmul %13, %11, %cst_10 {dimension_numbers = #tpu.dot_dimension_numbers<[1], [0], [0], [1], [0, 0, 1, 1], [], []>} : vector<256x64xbf16>, vector<64x32xbf16>, vector<256x32xf32> -> vector<256x32xf32>
    %15 = vector.broadcast %12 : vector<1x32xf32> to vector<256x32xf32>
    %16 = arith.addf %14, %15 : vector<256x32xf32>
    %cst_11 = arith.constant 0.000000e+00 : f32
    %17 = vector.broadcast %cst_11 : f32 to vector<256x32xf32>
    %18 = arith.maximumf %16, %17 : vector<256x32xf32>
    %c0_12 = arith.constant 0 : index
    %c0_13 = arith.constant 0 : index
    %19 = vector.load %arg6[%c0_12, %c0_13] : memref<32x16xbf16, #tpu.memory_space<vmem>>, vector<32x16xbf16>
    %c0_14 = arith.constant 0 : index
    %c0_15 = arith.constant 0 : index
    %20 = vector.load %arg7[%c0_14, %c0_15] : memref<1x16xf32, #tpu.memory_space<vmem>>, vector<1x16xf32>
    %21 = arith.truncf %18 : vector<256x32xf32> to vector<256x32xbf16>
    %cst_16 = arith.constant dense<0.000000e+00> : vector<256x16xf32>
    %22 = tpu.matmul %21, %19, %cst_16 {dimension_numbers = #tpu.dot_dimension_numbers<[1], [0], [0], [1], [0, 0, 1, 1], [], []>} : vector<256x32xbf16>, vector<32x16xbf16>, vector<256x16xf32> -> vector<256x16xf32>
    %23 = vector.broadcast %20 : vector<1x16xf32> to vector<256x16xf32>
    %24 = arith.addf %22, %23 : vector<256x16xf32>
    %25 = arith.mulf %7, %24 : vector<256x16xf32>
    %26 = arith.truncf %25 : vector<256x16xf32> to vector<256x16xbf16>
    %c0_17 = arith.constant 0 : index
    %c0_18 = arith.constant 0 : index
    %27 = vector.load %arg8[%c0_17, %c0_18] : memref<256x16xbf16, #tpu.memory_space<vmem>>, vector<256x16xbf16>
    tpu.vector_store %arg8[%c0_17, %c0_18], %26 {strides = array<i32>} : memref<256x16xbf16, #tpu.memory_space<vmem>>, vector<256x16xbf16>,
    return
  }
  func.func @transform_0(%arg0: i32) -> (i32, i32) {
    %c0_i32 = arith.constant 0 : i32
    %c0_i32_0 = arith.constant 0 : i32
    return %arg0, %c0_i32 : i32, i32
  }
  func.func @transform_1(%arg0: i32) -> (i32, i32) {
    %c0_i32 = arith.constant 0 : i32
    %c0_i32_0 = arith.constant 0 : i32
    %c0_i32_1 = arith.constant 0 : i32
    return %c0_i32, %c0_i32_0 : i32, i32
  }
  func.func @transform_2(%arg0: i32) -> (i32, i32) {
    %c0_i32 = arith.constant 0 : i32
    %c0_i32_0 = arith.constant 0 : i32
    %c0_i32_1 = arith.constant 0 : i32
    return %c0_i32, %c0_i32_0 : i32, i32
  }
  func.func @transform_3(%arg0: i32) -> (i32, i32) {
    %c0_i32 = arith.constant 0 : i32
    %c0_i32_0 = arith.constant 0 : i32
    %c0_i32_1 = arith.constant 0 : i32
    return %c0_i32, %c0_i32_0 : i32, i32
  }
  func.func @transform_4(%arg0: i32) -> (i32, i32) {
    %c0_i32 = arith.constant 0 : i32
    %c0_i32_0 = arith.constant 0 : i32
    %c0_i32_1 = arith.constant 0 : i32
    return %c0_i32, %c0_i32_0 : i32, i32
  }
  func.func @transform_5(%arg0: i32) -> (i32, i32) {
    %c0_i32 = arith.constant 0 : i32
    %c0_i32_0 = arith.constant 0 : i32
    %c0_i32_1 = arith.constant 0 : i32
    return %c0_i32, %c0_i32_0 : i32, i32
  }
  func.func @transform_6(%arg0: i32) -> (i32, i32) {
    %c0_i32 = arith.constant 0 : i32
    %c0_i32_0 = arith.constant 0 : i32
    %c0_i32_1 = arith.constant 0 : i32
    return %c0_i32, %c0_i32_0 : i32, i32
  }
  func.func @transform_7(%arg0: i32) -> (i32, i32) {
    %c0_i32 = arith.constant 0 : i32
    %c0_i32_0 = arith.constant 0 : i32
    return %arg0, %c0_i32 : i32, i32
  }
}

</mosaic_0001>

<llo_original>
// kernel: tpu_custom_call.1
$region0: #{tpu_custom_call.1}
  #allocation0 [shape = 'u32[]', space=smem, size = 0x4, offset = 0x4, fixed_abs, tag = 'smem constant byte address 0x4 - core index']
  #allocation1 [shape = 'u32[144,128]{1,0:T(1,128)}', space=vmem, size = 0x12000, scoped, tag = 'internal scratch']
  %s0 = inlined_call_operand.vmem [shape: f32[256,32], index: 0, kind: input, shape index: {}]
  %s1 = inlined_call_operand.vmem [shape: bf16[32,192], index: 1, kind: input, shape index: {}]
  %s2 = inlined_call_operand.vmem [shape: f32[1,192], index: 2, kind: input, shape index: {}]
  %s3 = inlined_call_operand.vmem [shape: bf16[64,32], index: 3, kind: input, shape index: {}]
  %s4 = inlined_call_operand.vmem [shape: f32[1,32], index: 4, kind: input, shape index: {}]
  %s5 = inlined_call_operand.vmem [shape: bf16[32,16], index: 5, kind: input, shape index: {}]
  %s6 = inlined_call_operand.vmem [shape: f32[1,16], index: 6, kind: input, shape index: {}]
  %s7 = inlined_call_operand.vmem [shape: bf16[256,16], index: 7, kind: output, shape index: {}]
  %s8 = sld [smem:[#allocation0]]
  $region38: #{tpu_custom_call.1} parent=0
    _
  %s10 = ssub.s32 1, %s8
  %s11 = scalar_select 0, %s10, %s8
  // Predicated region
  $region2: #{tpu_custom_call.1} parent=0 // pred_check
    _
  $region3: #{tpu_custom_call.1} parent=0 // pred_check_branch
    %13 = sbr.rel (0) target = $region5
  $region4: #{tpu_custom_call.1} parent=0 // pred_region
    _
  $region5: #{tpu_custom_call.1} parent=0 // pred_fallthru
    _
  // Predicated region
  $region6: #{tpu_custom_call.1} parent=0 // pred_check
    _
  $region7: #{tpu_custom_call.1} parent=0 // pred_check_branch
    %15 = sbr.rel (0) target = $region9
  $region8: #{tpu_custom_call.1} parent=0 // pred_region
    _
  $region9: #{tpu_custom_call.1} parent=0 // pred_fallthru
    _
  // Predicated region
  $region10: #{tpu_custom_call.1} parent=0 // pred_check
    _
  $region11: #{tpu_custom_call.1} parent=0 // pred_check_branch
    %17 = sbr.rel (0) target = $region13
  $region12: #{tpu_custom_call.1} parent=0 // pred_region
    _
  $region13: #{tpu_custom_call.1} parent=0 // pred_fallthru
    _
  // Predicated region
  $region14: #{tpu_custom_call.1} parent=0 // pred_check
    _
  $region15: #{tpu_custom_call.1} parent=0 // pred_check_branch
    %19 = sbr.rel (0) target = $region17
  $region16: #{tpu_custom_call.1} parent=0 // pred_region
    _
  $region17: #{tpu_custom_call.1} parent=0 // pred_fallthru
    _
  // Predicated region
  $region18: #{tpu_custom_call.1} parent=0 // pred_check
    _
  $region19: #{tpu_custom_call.1} parent=0 // pred_check_branch
    %21 = sbr.rel (0) target = $region21
  $region20: #{tpu_custom_call.1} parent=0 // pred_region
    _
  $region21: #{tpu_custom_call.1} parent=0 // pred_fallthru
    _
  // Predicated region
  $region22: #{tpu_custom_call.1} parent=0 // pred_check
    _
  $region23: #{tpu_custom_call.1} parent=0 // pred_check_branch
    %23 = sbr.rel (0) target = $region25
  $region24: #{tpu_custom_call.1} parent=0 // pred_region
    _
  $region25: #{tpu_custom_call.1} parent=0 // pred_fallthru
    _
  // Predicated region
  $region26: #{tpu_custom_call.1} parent=0 // pred_check
    _
  $region27: #{tpu_custom_call.1} parent=0 // pred_check_branch
    %25 = sbr.rel (0) target = $region29
  $region28: #{tpu_custom_call.1} parent=0 // pred_region
    _
  $region29: #{tpu_custom_call.1} parent=0 // pred_fallthru
    _
  %v27 = vld [vmem:[%s0] sm:$0xff]
  %v28 = vld [vmem:[%s0 + $0x8] sm:$0xff]
  %v29 = vld [vmem:[%s0 + $0x10] sm:$0xff]
  %v30 = vld [vmem:[%s0 + $0x18] sm:$0xff]
  %v31 = vld [vmem:[%s0 + $0x20] sm:$0xff]
  %v32 = vld [vmem:[%s0 + $0x28] sm:$0xff]
  %v33 = vld [vmem:[%s0 + $0x30] sm:$0xff]
  %v34 = vld [vmem:[%s0 + $0x38] sm:$0xff]
  %v35 = vld [vmem:[%s0 + $0x40] sm:$0xff]
  %v36 = vld [vmem:[%s0 + $0x48] sm:$0xff]
  %v37 = vld [vmem:[%s0 + $0x50] sm:$0xff]
  %v38 = vld [vmem:[%s0 + $0x58] sm:$0xff]
  %v39 = vld [vmem:[%s0 + $0x60] sm:$0xff]
  %v40 = vld [vmem:[%s0 + $0x68] sm:$0xff]
  %v41 = vld [vmem:[%s0 + $0x70] sm:$0xff]
  %v42 = vld [vmem:[%s0 + $0x78] sm:$0xff]
  %v43 = vld [vmem:[%s0 + $0x80] sm:$0xff]
  %v44 = vld [vmem:[%s0 + $0x88] sm:$0xff]
  %v45 = vld [vmem:[%s0 + $0x90] sm:$0xff]
  %v46 = vld [vmem:[%s0 + $0x98] sm:$0xff]
  %v47 = vld [vmem:[%s0 + $0xa0] sm:$0xff]
  %v48 = vld [vmem:[%s0 + $0xa8] sm:$0xff]
  %v49 = vld [vmem:[%s0 + $0xb0] sm:$0xff]
  %v50 = vld [vmem:[%s0 + $0xb8] sm:$0xff]
  %v51 = vld [vmem:[%s0 + $0xc0] sm:$0xff]
  %v52 = vld [vmem:[%s0 + $0xc8] sm:$0xff]
  %v53 = vld [vmem:[%s0 + $0xd0] sm:$0xff]
  %v54 = vld [vmem:[%s0 + $0xd8] sm:$0xff]
  %v55 = vld [vmem:[%s0 + $0xe0] sm:$0xff]
  %v56 = vld [vmem:[%s0 + $0xe8] sm:$0xff]
  %v57 = vld [vmem:[%s0 + $0xf0] sm:$0xff]
  %v58 = vld [vmem:[%s0 + $0xf8] sm:$0xff]
  %v59 = vpack.c.bf16 %v28, %v27
  %v60 = vpack.c.bf16 %v30, %v29
  %v61 = vpack.c.bf16 %v32, %v31
  %v62 = vpack.c.bf16 %v34, %v33
  %v63 = vpack.c.bf16 %v36, %v35
  %v64 = vpack.c.bf16 %v38, %v37
  %v65 = vpack.c.bf16 %v40, %v39
  %v66 = vpack.c.bf16 %v42, %v41
  %v67 = vpack.c.bf16 %v44, %v43
  %v68 = vpack.c.bf16 %v46, %v45
  %v69 = vpack.c.bf16 %v48, %v47
  %v70 = vpack.c.bf16 %v50, %v49
  %v71 = vpack.c.bf16 %v52, %v51
  %v72 = vpack.c.bf16 %v54, %v53
  %v73 = vpack.c.bf16 %v56, %v55
  %v74 = vpack.c.bf16 %v58, %v57
  %v75 = vld [vmem:[%s1] sm:$0xff]
  %v76 = vld [vmem:[%s1 + $0x8] sm:$0xff]
  %v77 = vld [vmem:[%s1 + $0x10] sm:$0xff]
  %v78 = vld [vmem:[%s1 + $0x18] sm:$0xff]
  %v79 = vld [vmem:[%s2] sm:$0x3]
  %v81 = vlaneseq
  %v82 = vshrl.u32 %v81, 7
  %v83 = vsub.s32 0, %v82
  %v84 = vrot.slane %v79, %v83
  %v85 = vlaneseq
  %v86 = vshrl.u32 %v85, 7
  %v87 = vsub.s32 1, %v86
  %v88 = vrot.slane %v79, %v87
  %v95 = vunpack.c.l.b16 %v75
  %v96 = vunpack.c.h.b16 %v75
  %v97 = vunpack.c.l.b16 %v76
  %v98 = vunpack.c.h.b16 %v76
  %v99 = vunpack.c.l.b16 %v77
  %v100 = vunpack.c.h.b16 %v77
  %v101 = vunpack.c.l.b16 %v78
  %v102 = vunpack.c.h.b16 %v78
  %v103 = vpack.c.b16 %v97, %v95
  %v104 = vpack.c.b16 %v98, %v96
  %v105 = vpack.c.b16 %v101, %v99
  %v106 = vpack.c.b16 %v102, %v100
  %vm111 = vcmask 261120
  %v113 = vsel %vm111, %v59, 0
  %v116 = vsel %vm111, %v60, 0
  %v119 = vsel %vm111, %v61, 0
  %v122 = vsel %vm111, %v62, 0
  %v125 = vsel %vm111, %v63, 0
  %v128 = vsel %vm111, %v64, 0
  %v131 = vsel %vm111, %v65, 0
  %v134 = vsel %vm111, %v66, 0
  %v137 = vsel %vm111, %v67, 0
  %v140 = vsel %vm111, %v68, 0
  %v143 = vsel %vm111, %v69, 0
  %v146 = vsel %vm111, %v70, 0
  %v149 = vsel %vm111, %v71, 0
  %v152 = vsel %vm111, %v72, 0
  %v155 = vsel %vm111, %v73, 0
  %v158 = vsel %vm111, %v74, 0
  %160 = vmatprep.subr.bf16.mxu0 %v104
  %161 = vmatpush1.bf16.msra.mxu0 %v103
  %162 = vmatprep.subr.bf16.mxu0 %v106
  %163 = vmatpush1.bf16.msra.mxu0 %v105
  %164 = vmatprep.subr.bf16.mxu0 0
  %165 = vmatpush1.bf16.msra.mxu0 0
  %166 = vmatprep.subr.bf16.mxu0 0
  %167 = vmatpush1.bf16.msra.mxu0 0
  %168 = vmatprep.subr.bf16.mxu0 0
  %169 = vmatpush1.bf16.msra.mxu0 0
  %170 = vmatprep.subr.bf16.mxu0 0
  %171 = vmatpush1.bf16.msra.mxu0 0
  %172 = vmatprep.subr.bf16.mxu0 0
  %173 = vmatpush1.bf16.msra.mxu0 0
  %174 = vmatprep.subr.bf16.mxu0 0
  %175 = vmatpush1.bf16.msra.mxu0 0
  %176 = vmatprep.subr.bf16.mxu0 0
  %177 = vmatpush1.bf16.msra.mxu0 0
  %178 = vmatprep.subr.bf16.mxu0 0
  %179 = vmatpush1.bf16.msra.mxu0 0
  %180 = vmatprep.subr.bf16.mxu0 0
  %181 = vmatpush1.bf16.msra.mxu0 0
  %182 = vmatprep.subr.bf16.mxu0 0
  %183 = vmatpush1.bf16.msra.mxu0 0
  %184 = vmatprep.subr.bf16.mxu0 0
  %185 = vmatpush1.bf16.msra.mxu0 0
  %186 = vmatprep.subr.bf16.mxu0 0
  %187 = vmatpush1.bf16.msra.mxu0 0
  %188 = vmatprep.subr.bf16.mxu0 0
  %189 = vmatpush1.bf16.msra.mxu0 0
  %190 = vmatprep.subr.bf16.mxu0 0
  %191 = vmatpush1.bf16.msra.mxu0 0
  %192 = vmatprep.mubr.bf16.mxu0 0
  %193 = vmatmul.mubr.bf16.gmra.mrb[0].mxu0 %v113
  %v194 = vpop.f32.mrb[0].mxu0
  %v195 = vadd.f32 %v84, %v194
  %v196 = vpop.f32.mrb[0].mxu0
  %v197 = vadd.f32 %v88, %v196
  %v198 = vpop.f32.mrb[0].mxu0
  %v199 = vadd.f32 %v84, %v198
  %v200 = vpop.f32.mrb[0].mxu0
  %v201 = vadd.f32 %v88, %v200
  %202 = vmatprep.mubr.bf16.mxu0 0
  %203 = vmatmul.mubr.bf16.gmra.mrb[0].mxu0 %v116
  %v204 = vpop.f32.mrb[0].mxu0
  %v205 = vadd.f32 %v84, %v204
  %v206 = vpop.f32.mrb[0].mxu0
  %v207 = vadd.f32 %v88, %v206
  %v208 = vpop.f32.mrb[0].mxu0
  %v209 = vadd.f32 %v84, %v208
  %v210 = vpop.f32.mrb[0].mxu0
  %v211 = vadd.f32 %v88, %v210
  %212 = vmatprep.mubr.bf16.mxu0 0
  %213 = vmatmul.mubr.bf16.gmra.mrb[0].mxu0 %v119
  %v214 = vpop.f32.mrb[0].mxu0
  %v215 = vadd.f32 %v84, %v214
  %v216 = vpop.f32.mrb[0].mxu0
  %v217 = vadd.f32 %v88, %v216
  %v218 = vpop.f32.mrb[0].mxu0
  %v219 = vadd.f32 %v84, %v218
  %v220 = vpop.f32.mrb[0].mxu0
  %v221 = vadd.f32 %v88, %v220
  %222 = vmatprep.mubr.bf16.mxu0 0
  %223 = vmatmul.mubr.bf16.gmra.mrb[0].mxu0 %v122
  %v224 = vpop.f32.mrb[0].mxu0
  %v225 = vadd.f32 %v84, %v224
  %v226 = vpop.f32.mrb[0].mxu0
  %v227 = vadd.f32 %v88, %v226
  %v228 = vpop.f32.mrb[0].mxu0
  %v229 = vadd.f32 %v84, %v228
  %v230 = vpop.f32.mrb[0].mxu0
  %v231 = vadd.f32 %v88, %v230
  %232 = vmatprep.mubr.bf16.mxu0 0
  %233 = vmatmul.mubr.bf16.gmra.mrb[0].mxu0 %v125
  %v234 = vpop.f32.mrb[0].mxu0
  %v235 = vadd.f32 %v84, %v234
  %v236 = vpop.f32.mrb[0].mxu0
  %v237 = vadd.f32 %v88, %v236
  %v238 = vpop.f32.mrb[0].mxu0
  %v239 = vadd.f32 %v84, %v238
  %v240 = vpop.f32.mrb[0].mxu0
  %v241 = vadd.f32 %v88, %v240
  %242 = vmatprep.mubr.bf16.mxu0 0
  %243 = vmatmul.mubr.bf16.gmra.mrb[0].mxu0 %v128
  %v244 = vpop.f32.mrb[0].mxu0
  %v245 = vadd.f32 %v84, %v244
  %v246 = vpop.f32.mrb[0].mxu0
  %v247 = vadd.f32 %v88, %v246
  %v248 = vpop.f32.mrb[0].mxu0
  %v249 = vadd.f32 %v84, %v248
  %v250 = vpop.f32.mrb[0].mxu0
  %v251 = vadd.f32 %v88, %v250
  %252 = vmatprep.mubr.bf16.mxu0 0
  %253 = vmatmul.mubr.bf16.gmra.mrb[0].mxu0 %v131
  %v254 = vpop.f32.mrb[0].mxu0
  %v255 = vadd.f32 %v84, %v254
  %v256 = vpop.f32.mrb[0].mxu0
  %v257 = vadd.f32 %v88, %v256
  %v258 = vpop.f32.mrb[0].mxu0
  %v259 = vadd.f32 %v84, %v258
  %v260 = vpop.f32.mrb[0].mxu0
  %v261 = vadd.f32 %v88, %v260
  %262 = vmatprep.mubr.bf16.mxu0 0
  %263 = vmatmul.mubr.bf16.gmra.mrb[0].mxu0 %v134
  %v264 = vpop.f32.mrb[0].mxu0
  %v265 = vadd.f32 %v84, %v264
  %v266 = vpop.f32.mrb[0].mxu0
  %v267 = vadd.f32 %v88, %v266
  %v268 = vpop.f32.mrb[0].mxu0
  %v269 = vadd.f32 %v84, %v268
  %v270 = vpop.f32.mrb[0].mxu0
  %v271 = vadd.f32 %v88, %v270
  %272 = vmatprep.mubr.bf16.mxu0 0
  %273 = vmatmul.mubr.bf16.gmra.mrb[0].mxu0 %v137
  %v274 = vpop.f32.mrb[0].mxu0
  %v275 = vadd.f32 %v84, %v274
  %v276 = vpop.f32.mrb[0].mxu0
  %v277 = vadd.f32 %v88, %v276
  %v278 = vpop.f32.mrb[0].mxu0
  %v279 = vadd.f32 %v84, %v278
  %v280 = vpop.f32.mrb[0].mxu0
  %v281 = vadd.f32 %v88, %v280
  %282 = vmatprep.mubr.bf16.mxu0 0
  %283 = vmatmul.mubr.bf16.gmra.mrb[0].mxu0 %v140
  %v284 = vpop.f32.mrb[0].mxu0
  %v285 = vadd.f32 %v84, %v284
  %v286 = vpop.f32.mrb[0].mxu0
  %v287 = vadd.f32 %v88, %v286
  %v288 = vpop.f32.mrb[0].mxu0
  %v289 = vadd.f32 %v84, %v288
  %v290 = vpop.f32.mrb[0].mxu0
  %v291 = vadd.f32 %v88, %v290
  %292 = vmatprep.mubr.bf16.mxu0 0
  %293 = vmatmul.mubr.bf16.gmra.mrb[0].mxu0 %v143
  %v294 = vpop.f32.mrb[0].mxu0
  %v295 = vadd.f32 %v84, %v294
  %v296 = vpop.f32.mrb[0].mxu0
  %v297 = vadd.f32 %v88, %v296
  %v298 = vpop.f32.mrb[0].mxu0
  %v299 = vadd.f32 %v84, %v298
  %v300 = vpop.f32.mrb[0].mxu0
  %v301 = vadd.f32 %v88, %v300
  %302 = vmatprep.mubr.bf16.mxu0 0
  %303 = vmatmul.mubr.bf16.gmra.mrb[0].mxu0 %v146
  %v304 = vpop.f32.mrb[0].mxu0
  %v305 = vadd.f32 %v84, %v304
  %v306 = vpop.f32.mrb[0].mxu0
  %v307 = vadd.f32 %v88, %v306
  %v308 = vpop.f32.mrb[0].mxu0
  %v309 = vadd.f32 %v84, %v308
  %v310 = vpop.f32.mrb[0].mxu0
  %v311 = vadd.f32 %v88, %v310
  %312 = vmatprep.mubr.bf16.mxu0 0
  %313 = vmatmul.mubr.bf16.gmra.mrb[0].mxu0 %v149
  %v314 = vpop.f32.mrb[0].mxu0
  %v315 = vadd.f32 %v84, %v314
  %v316 = vpop.f32.mrb[0].mxu0
  %v317 = vadd.f32 %v88, %v316
  %v318 = vpop.f32.mrb[0].mxu0
  %v319 = vadd.f32 %v84, %v318
  %v320 = vpop.f32.mrb[0].mxu0
  %v321 = vadd.f32 %v88, %v320
  %322 = vmatprep.mubr.bf16.mxu0 0
  %323 = vmatmul.mubr.bf16.gmra.mrb[0].mxu0 %v152
  %v324 = vpop.f32.mrb[0].mxu0
  %v325 = vadd.f32 %v84, %v324
  %v326 = vpop.f32.mrb[0].mxu0
  %v327 = vadd.f32 %v88, %v326
  %v328 = vpop.f32.mrb[0].mxu0
  %v329 = vadd.f32 %v84, %v328
  %v330 = vpop.f32.mrb[0].mxu0
  %v331 = vadd.f32 %v88, %v330
  %332 = vmatprep.mubr.bf16.mxu0 0
  %333 = vmatmul.mubr.bf16.gmra.mrb[0].mxu0 %v155
  %v334 = vpop.f32.mrb[0].mxu0
  %v335 = vadd.f32 %v84, %v334
  %v336 = vpop.f32.mrb[0].mxu0
  %v337 = vadd.f32 %v88, %v336
  %v338 = vpop.f32.mrb[0].mxu0
  %v339 = vadd.f32 %v84, %v338
  %v340 = vpop.f32.mrb[0].mxu0
  %v341 = vadd.f32 %v88, %v340
  %342 = vmatprep.mubr.bf16.mxu0 0
  %343 = vmatmul.mubr.bf16.gmra.mrb[0].mxu0 %v158
  %v344 = vpop.f32.mrb[0].mxu0
  %v345 = vadd.f32 %v84, %v344
  %v346 = vpop.f32.mrb[0].mxu0
  %v347 = vadd.f32 %v88, %v346
  %v348 = vpop.f32.mrb[0].mxu0
  %v349 = vadd.f32 %v84, %v348
  %v350 = vpop.f32.mrb[0].mxu0
  %v351 = vadd.f32 %v88, %v350
  %352 = vdwg.mxu0
  %v353 = vmax.f32 %v197, 0.0
  %v354 = vmax.f32 %v201, 0.0
  %v355 = vmax.f32 %v207, 0.0
  %v356 = vmax.f32 %v211, 0.0
  %v357 = vmax.f32 %v217, 0.0
  %v358 = vmax.f32 %v221, 0.0
  %v359 = vmax.f32 %v227, 0.0
  %v360 = vmax.f32 %v231, 0.0
  %v361 = vmax.f32 %v237, 0.0
  %v362 = vmax.f32 %v241, 0.0
  %v363 = vmax.f32 %v247, 0.0
  %v364 = vmax.f32 %v251, 0.0
  %v365 = vmax.f32 %v257, 0.0
  %v366 = vmax.f32 %v261, 0.0
  %v367 = vmax.f32 %v267, 0.0
  %v368 = vmax.f32 %v271, 0.0
  %v369 = vmax.f32 %v277, 0.0
  %v370 = vmax.f32 %v281, 0.0
  %v371 = vmax.f32 %v287, 0.0
  %v372 = vmax.f32 %v291, 0.0
  %v373 = vmax.f32 %v297, 0.0
  %v374 = vmax.f32 %v301, 0.0
  %v375 = vmax.f32 %v307, 0.0
  %v376 = vmax.f32 %v311, 0.0
  %v377 = vmax.f32 %v317, 0.0
  %v378 = vmax.f32 %v321, 0.0
  %v379 = vmax.f32 %v327, 0.0
  %v380 = vmax.f32 %v331, 0.0
  %v381 = vmax.f32 %v337, 0.0
  %v382 = vmax.f32 %v341, 0.0
  %v383 = vmax.f32 %v347, 0.0
  %v384 = vmax.f32 %v351, 0.0
  %v385 = vld [vmem:[%s3] sm:$0xf]
  %v386 = vld [vmem:[%s3 + $0x4] sm:$0xf]
  %v387 = vld [vmem:[%s3 + $0x8] sm:$0xf]
  %v388 = vld [vmem:[%s3 + $0xc] sm:$0xf]
  %v389 = vld [vmem:[%s3 + $0x10] sm:$0xf]
  %v390 = vld [vmem:[%s3 + $0x14] sm:$0xf]
  %v391 = vld [vmem:[%s3 + $0x18] sm:$0xf]
  %v392 = vld [vmem:[%s3 + $0x1c] sm:$0xf]
  %v393 = vld [vmem:[%s4] sm:$0x1]
  %v394 = vpack.c.bf16 %v354, %v353
  %v395 = vpack.c.bf16 %v356, %v355
  %v396 = vpack.c.bf16 %v358, %v357
  %v397 = vpack.c.bf16 %v360, %v359
  %v398 = vpack.c.bf16 %v362, %v361
  %v399 = vpack.c.bf16 %v364, %v363
  %v400 = vpack.c.bf16 %v366, %v365
  %v401 = vpack.c.bf16 %v368, %v367
  %v402 = vpack.c.bf16 %v370, %v369
  %v403 = vpack.c.bf16 %v372, %v371
  %v404 = vpack.c.bf16 %v374, %v373
  %v405 = vpack.c.bf16 %v376, %v375
  %v406 = vpack.c.bf16 %v378, %v377
  %v407 = vpack.c.bf16 %v380, %v379
  %v408 = vpack.c.bf16 %v382, %v381
  %v409 = vpack.c.bf16 %v384, %v383
  %v411 = vlaneseq
  %v412 = vshrl.u32 %v411, 7
  %v413 = vsub.s32 0, %v412
  %v414 = vrot.slane %v393, %v413
  %v424 = vunpack.c.l.b16 %v385
  %v425 = vunpack.c.l.b16 %v386
  %v426 = vunpack.c.l.b16 %v387
  %v427 = vunpack.c.l.b16 %v388
  %v428 = vunpack.c.l.b16 %v389
  %v429 = vunpack.c.l.b16 %v390
  %v430 = vunpack.c.l.b16 %v391
  %v431 = vunpack.c.l.b16 %v392
  %v432 = vpack.c.b16 %v425, %v424
  %v433 = vpack.c.b16 %v427, %v426
  %v434 = vpack.c.b16 %v429, %v428
  %v435 = vpack.c.b16 %v431, %v430
  %vm440 = vcmask 523264
  %v442 = vsel %vm440, %v394, 0
  %v445 = vsel %vm440, %v395, 0
  %v448 = vsel %vm440, %v396, 0
  %v451 = vsel %vm440, %v397, 0
  %v454 = vsel %vm440, %v398, 0
  %v457 = vsel %vm440, %v399, 0
  %v460 = vsel %vm440, %v400, 0
  %v463 = vsel %vm440, %v401, 0
  %v466 = vsel %vm440, %v402, 0
  %v469 = vsel %vm440, %v403, 0
  %v472 = vsel %vm440, %v404, 0
  %v475 = vsel %vm440, %v405, 0
  %v478 = vsel %vm440, %v406, 0
  %v481 = vsel %vm440, %v407, 0
  %v484 = vsel %vm440, %v408, 0
  %v487 = vsel %vm440, %v409, 0
  %489 = vmatprep.subr.bf16.mxu0 0
  %490 = vmatpush1.bf16.msra.mxu0 %v432
  %491 = vmatprep.subr.bf16.mxu0 0
  %492 = vmatpush1.bf16.msra.mxu0 %v433
  %493 = vmatprep.subr.bf16.mxu0 0
  %494 = vmatpush1.bf16.msra.mxu0 %v434
  %495 = vmatprep.subr.bf16.mxu0 0
  %496 = vmatpush1.bf16.msra.mxu0 %v435
  %497 = vmatprep.subr.bf16.mxu0 0
  %498 = vmatpush1.bf16.msra.mxu0 0
  %499 = vmatprep.subr.bf16.mxu0 0
  %500 = vmatpush1.bf16.msra.mxu0 0
  %501 = vmatprep.subr.bf16.mxu0 0
  %502 = vmatpush1.bf16.msra.mxu0 0
  %503 = vmatprep.subr.bf16.mxu0 0
  %504 = vmatpush1.bf16.msra.mxu0 0
  %505 = vmatprep.subr.bf16.mxu0 0
  %506 = vmatpush1.bf16.msra.mxu0 0
  %507 = vmatprep.subr.bf16.mxu0 0
  %508 = vmatpush1.bf16.msra.mxu0 0
  %509 = vmatprep.subr.bf16.mxu0 0
  %510 = vmatpush1.bf16.msra.mxu0 0
  %511 = vmatprep.subr.bf16.mxu0 0
  %512 = vmatpush1.bf16.msra.mxu0 0
  %513 = vmatprep.subr.bf16.mxu0 0
  %514 = vmatpush1.bf16.msra.mxu0 0
  %515 = vmatprep.subr.bf16.mxu0 0
  %516 = vmatpush1.bf16.msra.mxu0 0
  %517 = vmatprep.subr.bf16.mxu0 0
  %518 = vmatpush1.bf16.msra.mxu0 0
  %519 = vmatprep.subr.bf16.mxu0 0
  %520 = vmatpush1.bf16.msra.mxu0 0
  %521 = vmatprep.mubr.bf16.mxu0 0
  %522 = vmatmul.mubr.bf16.gmra.mrb[0].mxu0 %v442
  %v523 = vpop.f32.mrb[0].mxu0
  %v524 = vadd.f32 %v414, %v523
  %v525 = vpop.f32.mrb[0].mxu0
  %v526 = vpop.f32.mrb[0].mxu0
  %v527 = vadd.f32 %v414, %v526
  %v528 = vpop.f32.mrb[0].mxu0
  %529 = vmatprep.mubr.bf16.mxu0 0
  %530 = vmatmul.mubr.bf16.gmra.mrb[0].mxu0 %v445
  %v531 = vpop.f32.mrb[0].mxu0
  %v532 = vadd.f32 %v414, %v531
  %v533 = vpop.f32.mrb[0].mxu0
  %v534 = vpop.f32.mrb[0].mxu0
  %v535 = vadd.f32 %v414, %v534
  %v536 = vpop.f32.mrb[0].mxu0
  %537 = vmatprep.mubr.bf16.mxu0 0
  %538 = vmatmul.mubr.bf16.gmra.mrb[0].mxu0 %v448
  %v539 = vpop.f32.mrb[0].mxu0
  %v540 = vadd.f32 %v414, %v539
  %v541 = vpop.f32.mrb[0].mxu0
  %v542 = vpop.f32.mrb[0].mxu0
  %v543 = vadd.f32 %v414, %v542
  %v544 = vpop.f32.mrb[0].mxu0
  %545 = vmatprep.mubr.bf16.mxu0 0
  %546 = vmatmul.mubr.bf16.gmra.mrb[0].mxu0 %v451
  %v547 = vpop.f32.mrb[0].mxu0
  %v548 = vadd.f32 %v414, %v547
  %v549 = vpop.f32.mrb[0].mxu0
  %v550 = vpop.f32.mrb[0].mxu0
  %v551 = vadd.f32 %v414, %v550
  %v552 = vpop.f32.mrb[0].mxu0
  %553 = vmatprep.mubr.bf16.mxu0 0
  %554 = vmatmul.mubr.bf16.gmra.mrb[0].mxu0 %v454
  %v555 = vpop.f32.mrb[0].mxu0
  %v556 = vadd.f32 %v414, %v555
  %v557 = vpop.f32.mrb[0].mxu0
  %v558 = vpop.f32.mrb[0].mxu0
  %v559 = vadd.f32 %v414, %v558
  %v560 = vpop.f32.mrb[0].mxu0
  %561 = vmatprep.mubr.bf16.mxu0 0
  %562 = vmatmul.mubr.bf16.gmra.mrb[0].mxu0 %v457
  %v563 = vpop.f32.mrb[0].mxu0
  %v564 = vadd.f32 %v414, %v563
  %v565 = vpop.f32.mrb[0].mxu0
  %v566 = vpop.f32.mrb[0].mxu0
  %v567 = vadd.f32 %v414, %v566
  %v568 = vpop.f32.mrb[0].mxu0
  %569 = vmatprep.mubr.bf16.mxu0 0
  %570 = vmatmul.mubr.bf16.gmra.mrb[0].mxu0 %v460
  %v571 = vpop.f32.mrb[0].mxu0
  %v572 = vadd.f32 %v414, %v571
  %v573 = vpop.f32.mrb[0].mxu0
  %v574 = vpop.f32.mrb[0].mxu0
  %v575 = vadd.f32 %v414, %v574
  %v576 = vpop.f32.mrb[0].mxu0
  %577 = vmatprep.mubr.bf16.mxu0 0
  %578 = vmatmul.mubr.bf16.gmra.mrb[0].mxu0 %v463
  %v579 = vpop.f32.mrb[0].mxu0
  %v580 = vadd.f32 %v414, %v579
  %v581 = vpop.f32.mrb[0].mxu0
  %v582 = vpop.f32.mrb[0].mxu0
  %v583 = vadd.f32 %v414, %v582
  %v584 = vpop.f32.mrb[0].mxu0
  %585 = vmatprep.mubr.bf16.mxu0 0
  %586 = vmatmul.mubr.bf16.gmra.mrb[0].mxu0 %v466
  %v587 = vpop.f32.mrb[0].mxu0
  %v588 = vadd.f32 %v414, %v587
  %v589 = vpop.f32.mrb[0].mxu0
  %v590 = vpop.f32.mrb[0].mxu0
  %v591 = vadd.f32 %v414, %v590
  %v592 = vpop.f32.mrb[0].mxu0
  %593 = vmatprep.mubr.bf16.mxu0 0
  %594 = vmatmul.mubr.bf16.gmra.mrb[0].mxu0 %v469
  %v595 = vpop.f32.mrb[0].mxu0
  %v596 = vadd.f32 %v414, %v595
  %v597 = vpop.f32.mrb[0].mxu0
  %v598 = vpop.f32.mrb[0].mxu0
  %v599 = vadd.f32 %v414, %v598
  %v600 = vpop.f32.mrb[0].mxu0
  %601 = vmatprep.mubr.bf16.mxu0 0
  %602 = vmatmul.mubr.bf16.gmra.mrb[0].mxu0 %v472
  %v603 = vpop.f32.mrb[0].mxu0
  %v604 = vadd.f32 %v414, %v603
  %v605 = vpop.f32.mrb[0].mxu0
  %v606 = vpop.f32.mrb[0].mxu0
  %v607 = vadd.f32 %v414, %v606
  %v608 = vpop.f32.mrb[0].mxu0
  %609 = vmatprep.mubr.bf16.mxu0 0
  %610 = vmatmul.mubr.bf16.gmra.mrb[0].mxu0 %v475
  %v611 = vpop.f32.mrb[0].mxu0
  %v612 = vadd.f32 %v414, %v611
  %v613 = vpop.f32.mrb[0].mxu0
  %v614 = vpop.f32.mrb[0].mxu0
  %v615 = vadd.f32 %v414, %v614
  %v616 = vpop.f32.mrb[0].mxu0
  %617 = vmatprep.mubr.bf16.mxu0 0
  %618 = vmatmul.mubr.bf16.gmra.mrb[0].mxu0 %v478
  %v619 = vpop.f32.mrb[0].mxu0
  %v620 = vadd.f32 %v414, %v619
  %v621 = vpop.f32.mrb[0].mxu0
  %v622 = vpop.f32.mrb[0].mxu0
  %v623 = vadd.f32 %v414, %v622
  %v624 = vpop.f32.mrb[0].mxu0
  %625 = vmatprep.mubr.bf16.mxu0 0
  %626 = vmatmul.mubr.bf16.gmra.mrb[0].mxu0 %v481
  %v627 = vpop.f32.mrb[0].mxu0
  %v628 = vadd.f32 %v414, %v627
  %v629 = vpop.f32.mrb[0].mxu0
  %v630 = vpop.f32.mrb[0].mxu0
  %v631 = vadd.f32 %v414, %v630
  %v632 = vpop.f32.mrb[0].mxu0
  %633 = vmatprep.mubr.bf16.mxu0 0
  %634 = vmatmul.mubr.bf16.gmra.mrb[0].mxu0 %v484
  %v635 = vpop.f32.mrb[0].mxu0
  %v636 = vadd.f32 %v414, %v635
  %v637 = vpop.f32.mrb[0].mxu0
  %v638 = vpop.f32.mrb[0].mxu0
  %v639 = vadd.f32 %v414, %v638
  %v640 = vpop.f32.mrb[0].mxu0
  %641 = vmatprep.mubr.bf16.mxu0 0
  %642 = vmatmul.mubr.bf16.gmra.mrb[0].mxu0 %v487
  %v643 = vpop.f32.mrb[0].mxu0
  %v644 = vadd.f32 %v414, %v643
  %v645 = vpop.f32.mrb[0].mxu0
  %v646 = vpop.f32.mrb[0].mxu0
  %v647 = vadd.f32 %v414, %v646
  %v648 = vpop.f32.mrb[0].mxu0
  %649 = vdwg.mxu0
  %v650 = vmax.f32 %v524, 0.0
  %v651 = vmax.f32 %v527, 0.0
  %v652 = vmax.f32 %v532, 0.0
  %v653 = vmax.f32 %v535, 0.0
  %v654 = vmax.f32 %v540, 0.0
  %v655 = vmax.f32 %v543, 0.0
  %v656 = vmax.f32 %v548, 0.0
  %v657 = vmax.f32 %v551, 0.0
  %v658 = vmax.f32 %v556, 0.0
  %v659 = vmax.f32 %v559, 0.0
  %v660 = vmax.f32 %v564, 0.0
  %v661 = vmax.f32 %v567, 0.0
  %v662 = vmax.f32 %v572, 0.0
  %v663 = vmax.f32 %v575, 0.0
  %v664 = vmax.f32 %v580, 0.0
  %v665 = vmax.f32 %v583, 0.0
  %v666 = vmax.f32 %v588, 0.0
  %v667 = vmax.f32 %v591, 0.0
  %v668 = vmax.f32 %v596, 0.0
  %v669 = vmax.f32 %v599, 0.0
  %v670 = vmax.f32 %v604, 0.0
  %v671 = vmax.f32 %v607, 0.0
  %v672 = vmax.f32 %v612, 0.0
  %v673 = vmax.f32 %v615, 0.0
  %v674 = vmax.f32 %v620, 0.0
  %v675 = vmax.f32 %v623, 0.0
  %v676 = vmax.f32 %v628, 0.0
  %v677 = vmax.f32 %v631, 0.0
  %v678 = vmax.f32 %v636, 0.0
  %v679 = vmax.f32 %v639, 0.0
  %v680 = vmax.f32 %v644, 0.0
  %v681 = vmax.f32 %v647, 0.0
  %v682 = vld [vmem:[%s5] sm:$0xf]
  %v683 = vld [vmem:[%s5 + $0x4] sm:$0xf]
  %v684 = vld [vmem:[%s5 + $0x8] sm:$0xf]
  %v685 = vld [vmem:[%s5 + $0xc] sm:$0xf]
  %v686 = vld [vmem:[%s6] sm:$0x1]
  %v687 = vpack.c.bf16 %v651, %v650
  %v688 = vpack.c.bf16 %v653, %v652
  %v689 = vpack.c.bf16 %v655, %v654
  %v690 = vpack.c.bf16 %v657, %v656
  %v691 = vpack.c.bf16 %v659, %v658
  %v692 = vpack.c.bf16 %v661, %v660
  %v693 = vpack.c.bf16 %v663, %v662
  %v694 = vpack.c.bf16 %v665, %v664
  %v695 = vpack.c.bf16 %v667, %v666
  %v696 = vpack.c.bf16 %v669, %v668
  %v697 = vpack.c.bf16 %v671, %v670
  %v698 = vpack.c.bf16 %v673, %v672
  %v699 = vpack.c.bf16 %v675, %v674
  %v700 = vpack.c.bf16 %v677, %v676
  %v701 = vpack.c.bf16 %v679, %v678
  %v702 = vpack.c.bf16 %v681, %v680
  %v704 = vlaneseq
  %v705 = vshrl.u32 %v704, 7
  %v706 = vsub.s32 0, %v705
  %v707 = vrot.slane %v686, %v706
  %v713 = vunpack.c.l.b16 %v682
  %v714 = vunpack.c.l.b16 %v683
  %v715 = vunpack.c.l.b16 %v684
  %v716 = vunpack.c.l.b16 %v685
  %v717 = vpack.c.b16 %v714, %v713
  %v718 = vpack.c.b16 %v716, %v715
  %v722 = vsel %vm111, %v687, 0
  %v725 = vsel %vm111, %v688, 0
  %v728 = vsel %vm111, %v689, 0
  %v731 = vsel %vm111, %v690, 0
  %v734 = vsel %vm111, %v691, 0
  %v737 = vsel %vm111, %v692, 0
  %v740 = vsel %vm111, %v693, 0
  %v743 = vsel %vm111, %v694, 0
  %v746 = vsel %vm111, %v695, 0
  %v749 = vsel %vm111, %v696, 0
  %v752 = vsel %vm111, %v697, 0
  %v755 = vsel %vm111, %v698, 0
  %v758 = vsel %vm111, %v699, 0
  %v761 = vsel %vm111, %v700, 0
  %v764 = vsel %vm111, %v701, 0
  %v767 = vsel %vm111, %v702, 0
  %769 = vmatprep.subr.bf16.mxu0 0
  %770 = vmatpush1.bf16.msra.mxu0 %v717
  %771 = vmatprep.subr.bf16.mxu0 0
  %772 = vmatpush1.bf16.msra.mxu0 %v718
  %773 = vmatprep.subr.bf16.mxu0 0
  %774 = vmatpush1.bf16.msra.mxu0 0
  %775 = vmatprep.subr.bf16.mxu0 0
  %776 = vmatpush1.bf16.msra.mxu0 0
  %777 = vmatprep.subr.bf16.mxu0 0
  %778 = vmatpush1.bf16.msra.mxu0 0
  %779 = vmatprep.subr.bf16.mxu0 0
  %780 = vmatpush1.bf16.msra.mxu0 0
  %781 = vmatprep.subr.bf16.mxu0 0
  %782 = vmatpush1.bf16.msra.mxu0 0
  %783 = vmatprep.subr.bf16.mxu0 0
  %784 = vmatpush1.bf16.msra.mxu0 0
  %785 = vmatprep.subr.bf16.mxu0 0
  %786 = vmatpush1.bf16.msra.mxu0 0
  %787 = vmatprep.subr.bf16.mxu0 0
  %788 = vmatpush1.bf16.msra.mxu0 0
  %789 = vmatprep.subr.bf16.mxu0 0
  %790 = vmatpush1.bf16.msra.mxu0 0
  %791 = vmatprep.subr.bf16.mxu0 0
  %792 = vmatpush1.bf16.msra.mxu0 0
  %793 = vmatprep.subr.bf16.mxu0 0
  %794 = vmatpush1.bf16.msra.mxu0 0
  %795 = vmatprep.subr.bf16.mxu0 0
  %796 = vmatpush1.bf16.msra.mxu0 0
  %797 = vmatprep.subr.bf16.mxu0 0
  %798 = vmatpush1.bf16.msra.mxu0 0
  %799 = vmatprep.subr.bf16.mxu0 0
  %800 = vmatpush1.bf16.msra.mxu0 0
  %801 = vmatprep.mubr.bf16.mxu0 0
  %802 = vmatmul.mubr.bf16.gmra.mrb[0].mxu0 %v722
  %v803 = vpop.f32.mrb[0].mxu0
  %v804 = vadd.f32 %v707, %v803
  %v805 = vpop.f32.mrb[0].mxu0
  %v806 = vpop.f32.mrb[0].mxu0
  %v807 = vadd.f32 %v707, %v806
  %v808 = vpop.f32.mrb[0].mxu0
  %809 = vmatprep.mubr.bf16.mxu0 0
  %810 = vmatmul.mubr.bf16.gmra.mrb[0].mxu0 %v725
  %v811 = vpop.f32.mrb[0].mxu0
  %v812 = vadd.f32 %v707, %v811
  %v813 = vpop.f32.mrb[0].mxu0
  %v814 = vpop.f32.mrb[0].mxu0
  %v815 = vadd.f32 %v707, %v814
  %v816 = vpop.f32.mrb[0].mxu0
  %817 = vmatprep.mubr.bf16.mxu0 0
  %818 = vmatmul.mubr.bf16.gmra.mrb[0].mxu0 %v728
  %v819 = vpop.f32.mrb[0].mxu0
  %v820 = vadd.f32 %v707, %v819
  %v821 = vpop.f32.mrb[0].mxu0
  %v822 = vpop.f32.mrb[0].mxu0
  %v823 = vadd.f32 %v707, %v822
  %v824 = vpop.f32.mrb[0].mxu0
  %825 = vmatprep.mubr.bf16.mxu0 0
  %826 = vmatmul.mubr.bf16.gmra.mrb[0].mxu0 %v731
  %v827 = vpop.f32.mrb[0].mxu0
  %v828 = vadd.f32 %v707, %v827
  %v829 = vpop.f32.mrb[0].mxu0
  %v830 = vpop.f32.mrb[0].mxu0
  %v831 = vadd.f32 %v707, %v830
  %v832 = vpop.f32.mrb[0].mxu0
  %833 = vmatprep.mubr.bf16.mxu0 0
  %834 = vmatmul.mubr.bf16.gmra.mrb[0].mxu0 %v734
  %v835 = vpop.f32.mrb[0].mxu0
  %v836 = vadd.f32 %v707, %v835
  %v837 = vpop.f32.mrb[0].mxu0
  %v838 = vpop.f32.mrb[0].mxu0
  %v839 = vadd.f32 %v707, %v838
  %v840 = vpop.f32.mrb[0].mxu0
  %841 = vmatprep.mubr.bf16.mxu0 0
  %842 = vmatmul.mubr.bf16.gmra.mrb[0].mxu0 %v737
  %v843 = vpop.f32.mrb[0].mxu0
  %v844 = vadd.f32 %v707, %v843
  %v845 = vpop.f32.mrb[0].mxu0
  %v846 = vpop.f32.mrb[0].mxu0
  %v847 = vadd.f32 %v707, %v846
  %v848 = vpop.f32.mrb[0].mxu0
  %849 = vmatprep.mubr.bf16.mxu0 0
  %850 = vmatmul.mubr.bf16.gmra.mrb[0].mxu0 %v740
  %v851 = vpop.f32.mrb[0].mxu0
  %v852 = vadd.f32 %v707, %v851
  %v853 = vpop.f32.mrb[0].mxu0
  %v854 = vpop.f32.mrb[0].mxu0
  %v855 = vadd.f32 %v707, %v854
  %v856 = vpop.f32.mrb[0].mxu0
  %857 = vmatprep.mubr.bf16.mxu0 0
  %858 = vmatmul.mubr.bf16.gmra.mrb[0].mxu0 %v743
  %v859 = vpop.f32.mrb[0].mxu0
  %v860 = vadd.f32 %v707, %v859
  %v861 = vpop.f32.mrb[0].mxu0
  %v862 = vpop.f32.mrb[0].mxu0
  %v863 = vadd.f32 %v707, %v862
  %v864 = vpop.f32.mrb[0].mxu0
  %865 = vmatprep.mubr.bf16.mxu0 0
  %866 = vmatmul.mubr.bf16.gmra.mrb[0].mxu0 %v746
  %v867 = vpop.f32.mrb[0].mxu0
  %v868 = vadd.f32 %v707, %v867
  %v869 = vpop.f32.mrb[0].mxu0
  %v870 = vpop.f32.mrb[0].mxu0
  %v871 = vadd.f32 %v707, %v870
  %v872 = vpop.f32.mrb[0].mxu0
  %873 = vmatprep.mubr.bf16.mxu0 0
  %874 = vmatmul.mubr.bf16.gmra.mrb[0].mxu0 %v749
  %v875 = vpop.f32.mrb[0].mxu0
  %v876 = vadd.f32 %v707, %v875
  %v877 = vpop.f32.mrb[0].mxu0
  %v878 = vpop.f32.mrb[0].mxu0
  %v879 = vadd.f32 %v707, %v878
  %v880 = vpop.f32.mrb[0].mxu0
  %881 = vmatprep.mubr.bf16.mxu0 0
  %882 = vmatmul.mubr.bf16.gmra.mrb[0].mxu0 %v752
  %v883 = vpop.f32.mrb[0].mxu0
  %v884 = vadd.f32 %v707, %v883
  %v885 = vpop.f32.mrb[0].mxu0
  %v886 = vpop.f32.mrb[0].mxu0
  %v887 = vadd.f32 %v707, %v886
  %v888 = vpop.f32.mrb[0].mxu0
  %889 = vmatprep.mubr.bf16.mxu0 0
  %890 = vmatmul.mubr.bf16.gmra.mrb[0].mxu0 %v755
  %v891 = vpop.f32.mrb[0].mxu0
  %v892 = vadd.f32 %v707, %v891
  %v893 = vpop.f32.mrb[0].mxu0
  %v894 = vpop.f32.mrb[0].mxu0
  %v895 = vadd.f32 %v707, %v894
  %v896 = vpop.f32.mrb[0].mxu0
  %897 = vmatprep.mubr.bf16.mxu0 0
  %898 = vmatmul.mubr.bf16.gmra.mrb[0].mxu0 %v758
  %v899 = vpop.f32.mrb[0].mxu0
  %v900 = vadd.f32 %v707, %v899
  %v901 = vpop.f32.mrb[0].mxu0
  %v902 = vpop.f32.mrb[0].mxu0
  %v903 = vadd.f32 %v707, %v902
  %v904 = vpop.f32.mrb[0].mxu0
  %905 = vmatprep.mubr.bf16.mxu0 0
  %906 = vmatmul.mubr.bf16.gmra.mrb[0].mxu0 %v761
  %v907 = vpop.f32.mrb[0].mxu0
  %v908 = vadd.f32 %v707, %v907
  %v909 = vpop.f32.mrb[0].mxu0
  %v910 = vpop.f32.mrb[0].mxu0
  %v911 = vadd.f32 %v707, %v910
  %v912 = vpop.f32.mrb[0].mxu0
  %913 = vmatprep.mubr.bf16.mxu0 0
  %914 = vmatmul.mubr.bf16.gmra.mrb[0].mxu0 %v764
  %v915 = vpop.f32.mrb[0].mxu0
  %v916 = vadd.f32 %v707, %v915
  %v917 = vpop.f32.mrb[0].mxu0
  %v918 = vpop.f32.mrb[0].mxu0
  %v919 = vadd.f32 %v707, %v918
  %v920 = vpop.f32.mrb[0].mxu0
  %921 = vmatprep.mubr.bf16.mxu0 0
  %922 = vmatmul.mubr.bf16.gmra.mrb[0].mxu0 %v767
  %v923 = vpop.f32.mrb[0].mxu0
  %v924 = vadd.f32 %v707, %v923
  %v925 = vpop.f32.mrb[0].mxu0
  %v926 = vpop.f32.mrb[0].mxu0
  %v927 = vadd.f32 %v707, %v926
  %v928 = vpop.f32.mrb[0].mxu0
  %929 = vdwg.mxu0
  %v930 = vmul.f32 %v195, %v804
  %v931 = vmul.f32 %v199, %v807
  %v932 = vmul.f32 %v205, %v812
  %v933 = vmul.f32 %v209, %v815
  %v934 = vmul.f32 %v215, %v820
  %v935 = vmul.f32 %v219, %v823
  %v936 = vmul.f32 %v225, %v828
  %v937 = vmul.f32 %v229, %v831
  %v938 = vmul.f32 %v235, %v836
  %v939 = vmul.f32 %v239, %v839
  %v940 = vmul.f32 %v245, %v844
  %v941 = vmul.f32 %v249, %v847
  %v942 = vmul.f32 %v255, %v852
  %v943 = vmul.f32 %v259, %v855
  %v944 = vmul.f32 %v265, %v860
  %v945 = vmul.f32 %v269, %v863
  %v946 = vmul.f32 %v275, %v868
  %v947 = vmul.f32 %v279, %v871
  %v948 = vmul.f32 %v285, %v876
  %v949 = vmul.f32 %v289, %v879
  %v950 = vmul.f32 %v295, %v884
  %v951 = vmul.f32 %v299, %v887
  %v952 = vmul.f32 %v305, %v892
  %v953 = vmul.f32 %v309, %v895
  %v954 = vmul.f32 %v315, %v900
  %v955 = vmul.f32 %v319, %v903
  %v956 = vmul.f32 %v325, %v908
  %v957 = vmul.f32 %v329, %v911
  %v958 = vmul.f32 %v335, %v916
  %v959 = vmul.f32 %v339, %v919
  %v960 = vmul.f32 %v345, %v924
  %v961 = vmul.f32 %v349, %v927
  %v962 = vpack.c.bf16 %v931, %v930
  %v963 = vpack.c.bf16 %v933, %v932
  %v964 = vpack.c.bf16 %v935, %v934
  %v965 = vpack.c.bf16 %v937, %v936
  %v966 = vpack.c.bf16 %v939, %v938
  %v967 = vpack.c.bf16 %v941, %v940
  %v968 = vpack.c.bf16 %v943, %v942
  %v969 = vpack.c.bf16 %v945, %v944
  %v970 = vpack.c.bf16 %v947, %v946
  %v971 = vpack.c.bf16 %v949, %v948
  %v972 = vpack.c.bf16 %v951, %v950
  %v973 = vpack.c.bf16 %v953, %v952
  %v974 = vpack.c.bf16 %v955, %v954
  %v975 = vpack.c.bf16 %v957, %v956
  %v976 = vpack.c.bf16 %v959, %v958
  %v977 = vpack.c.bf16 %v961, %v960
  %v994 = vunpack.c.l.b16 %v962
  %v995 = vunpack.c.h.b16 %v962
  %v996 = vunpack.c.l.b16 %v963
  %v997 = vunpack.c.h.b16 %v963
  %v998 = vunpack.c.l.b16 %v964
  %v999 = vunpack.c.h.b16 %v964
  %v1000 = vunpack.c.l.b16 %v965
  %v1001 = vunpack.c.h.b16 %v965
  %v1002 = vunpack.c.l.b16 %v966
  %v1003 = vunpack.c.h.b16 %v966
  %v1004 = vunpack.c.l.b16 %v967
  %v1005 = vunpack.c.h.b16 %v967
  %v1006 = vunpack.c.l.b16 %v968
  %v1007 = vunpack.c.h.b16 %v968
  %v1008 = vunpack.c.l.b16 %v969
  %v1009 = vunpack.c.h.b16 %v969
  %v1010 = vunpack.c.l.b16 %v970
  %v1011 = vunpack.c.h.b16 %v970
  %v1012 = vunpack.c.l.b16 %v971
  %v1013 = vunpack.c.h.b16 %v971
  %v1014 = vunpack.c.l.b16 %v972
  %v1015 = vunpack.c.h.b16 %v972
  %v1016 = vunpack.c.l.b16 %v973
  %v1017 = vunpack.c.h.b16 %v973
  %v1018 = vunpack.c.l.b16 %v974
  %v1019 = vunpack.c.h.b16 %v974
  %v1020 = vunpack.c.l.b16 %v975
  %v1021 = vunpack.c.h.b16 %v975
  %v1022 = vunpack.c.l.b16 %v976
  %v1023 = vunpack.c.h.b16 %v976
  %v1024 = vunpack.c.l.b16 %v977
  %v1025 = vunpack.c.h.b16 %v977
  %v1026 = vpack.c.b16 %v994, %v994
  %v1027 = vpack.c.b16 %v995, %v995
  %v1028 = vpack.c.b16 %v996, %v996
  %v1029 = vpack.c.b16 %v997, %v997
  %v1030 = vpack.c.b16 %v998, %v998
  %v1031 = vpack.c.b16 %v999, %v999
  %v1032 = vpack.c.b16 %v1000, %v1000
  %v1033 = vpack.c.b16 %v1001, %v1001
  %v1034 = vpack.c.b16 %v1002, %v1002
  %v1035 = vpack.c.b16 %v1003, %v1003
  %v1036 = vpack.c.b16 %v1004, %v1004
  %v1037 = vpack.c.b16 %v1005, %v1005
  %v1038 = vpack.c.b16 %v1006, %v1006
  %v1039 = vpack.c.b16 %v1007, %v1007
  %v1040 = vpack.c.b16 %v1008, %v1008
  %v1041 = vpack.c.b16 %v1009, %v1009
  %v1042 = vpack.c.b16 %v1010, %v1010
  %v1043 = vpack.c.b16 %v1011, %v1011
  %v1044 = vpack.c.b16 %v1012, %v1012
  %v1045 = vpack.c.b16 %v1013, %v1013
  %v1046 = vpack.c.b16 %v1014, %v1014
  %v1047 = vpack.c.b16 %v1015, %v1015
  %v1048 = vpack.c.b16 %v1016, %v1016
  %v1049 = vpack.c.b16 %v1017, %v1017
  %v1050 = vpack.c.b16 %v1018, %v1018
  %v1051 = vpack.c.b16 %v1019, %v1019
  %v1052 = vpack.c.b16 %v1020, %v1020
  %v1053 = vpack.c.b16 %v1021, %v1021
  %v1054 = vpack.c.b16 %v1022, %v1022
  %v1055 = vpack.c.b16 %v1023, %v1023
  %v1056 = vpack.c.b16 %v1024, %v1024
  %v1057 = vpack.c.b16 %v1025, %v1025
  %vm1090 = vcmask 125952
  %1091 = vst.msk [vmem:[%s7] sm:$0xf] %vm1090, %v1026
  %1092 = vst.msk [vmem:[%s7 + $0x4] sm:$0xf] %vm1090, %v1027
  %1093 = vst.msk [vmem:[%s7 + $0x8] sm:$0xf] %vm1090, %v1028
  %1094 = vst.msk [vmem:[%s7 + $0xc] sm:$0xf] %vm1090, %v1029
  %1095 = vst.msk [vmem:[%s7 + $0x10] sm:$0xf] %vm1090, %v1030
  %1096 = vst.msk [vmem:[%s7 + $0x14] sm:$0xf] %vm1090, %v1031
  %1097 = vst.msk [vmem:[%s7 + $0x18] sm:$0xf] %vm1090, %v1032
  %1098 = vst.msk [vmem:[%s7 + $0x1c] sm:$0xf] %vm1090, %v1033
  %1099 = vst.msk [vmem:[%s7 + $0x20] sm:$0xf] %vm1090, %v1034
  %1100 = vst.msk [vmem:[%s7 + $0x24] sm:$0xf] %vm1090, %v1035
  %1101 = vst.msk [vmem:[%s7 + $0x28] sm:$0xf] %vm1090, %v1036
  %1102 = vst.msk [vmem:[%s7 + $0x2c] sm:$0xf] %vm1090, %v1037
  %1103 = vst.msk [vmem:[%s7 + $0x30] sm:$0xf] %vm1090, %v1038
  %1104 = vst.msk [vmem:[%s7 + $0x34] sm:$0xf] %vm1090, %v1039
  %1105 = vst.msk [vmem:[%s7 + $0x38] sm:$0xf] %vm1090, %v1040
  %1106 = vst.msk [vmem:[%s7 + $0x3c] sm:$0xf] %vm1090, %v1041
  %1107 = vst.msk [vmem:[%s7 + $0x40] sm:$0xf] %vm1090, %v1042
  %1108 = vst.msk [vmem:[%s7 + $0x44] sm:$0xf] %vm1090, %v1043
  %1109 = vst.msk [vmem:[%s7 + $0x48] sm:$0xf] %vm1090, %v1044
  %1110 = vst.msk [vmem:[%s7 + $0x4c] sm:$0xf] %vm1090, %v1045
  %1111 = vst.msk [vmem:[%s7 + $0x50] sm:$0xf] %vm1090, %v1046
  %1112 = vst.msk [vmem:[%s7 + $0x54] sm:$0xf] %vm1090, %v1047
  %1113 = vst.msk [vmem:[%s7 + $0x58] sm:$0xf] %vm1090, %v1048
  %1114 = vst.msk [vmem:[%s7 + $0x5c] sm:$0xf] %vm1090, %v1049
  %1115 = vst.msk [vmem:[%s7 + $0x60] sm:$0xf] %vm1090, %v1050
  %1116 = vst.msk [vmem:[%s7 + $0x64] sm:$0xf] %vm1090, %v1051
  %1117 = vst.msk [vmem:[%s7 + $0x68] sm:$0xf] %vm1090, %v1052
  %1118 = vst.msk [vmem:[%s7 + $0x6c] sm:$0xf] %vm1090, %v1053
  %1119 = vst.msk [vmem:[%s7 + $0x70] sm:$0xf] %vm1090, %v1054
  %1120 = vst.msk [vmem:[%s7 + $0x74] sm:$0xf] %vm1090, %v1055
  %1121 = vst.msk [vmem:[%s7 + $0x78] sm:$0xf] %vm1090, %v1056
  %1122 = vst.msk [vmem:[%s7 + $0x7c] sm:$0xf] %vm1090, %v1057
  // Predicated region
  $region30: #{tpu_custom_call.1} parent=0 // pred_check
    _
  $region31: #{tpu_custom_call.1} parent=0 // pred_check_branch
    %1124 = sbr.rel (0) target = $region33
  $region32: #{tpu_custom_call.1} parent=0 // pred_region
    _
  $region33: #{tpu_custom_call.1} parent=0 // pred_fallthru
    _
  // Predicated region
  $region34: #{tpu_custom_call.1} parent=0 // pred_check
    _
  $region35: #{tpu_custom_call.1} parent=0 // pred_check_branch
    %1126 = sbr.rel (0) target = $region37
  $region36: #{tpu_custom_call.1} parent=0 // pred_region
    _
  $region37: #{tpu_custom_call.1} parent=0 // pred_fallthru
    _

</llo_original>
